<compile_context>
chip_gen: v5e
topology: v5e:2x2
jax: 0.10.0
libtpu: 0.0.40
codegen_flags: <defaults>
</compile_context>

<pallas_src>
import jax
import jax.numpy as jnp
from jax.experimental import pallas as pl
from jax.experimental.pallas import tpu as pltpu


def _round_up(x, m):
    return ((x + m - 1) // m) * m


def _cdiv(a, b):
    return -(-a // b)


# ----------------------------------------------------------------------------
# Pallas kernel: fused (folded down_proj) + merge_feat over a tile of match rows
# ----------------------------------------------------------------------------
def _fine_merge_kernel(f_ref, c_ref, wdc_ref, wmf_ref, bdc_ref, out_ref):
    # f_ref   : [TM, WWp, CF]  gathered fine windows (compute dtype); rows >= WW are dummy
    # c_ref   : [TM, CC]       gathered coarse features (compute dtype)
    # wdc_ref : [CC, CF]       folded weight  Wd @ Wmc
    # wmf_ref : [CF, CF]       merge_feat weight, fine-feature half
    # bdc_ref : [1,  CF]       folded bias   bd @ Wmc + bm  (f32)
    # out_ref : [TM, WW, CF]   only the true WW window rows are stored (WW <= WWp)
    TM, WWp, CF = f_ref.shape
    WW = out_ref.shape[1]

    # coarse path: single MXU pass (down_proj was folded through merge_feat offline)
    c_contrib = jnp.dot(c_ref[...], wdc_ref[...],
                        preferred_element_type=jnp.float32) + bdc_ref[...]

    # fine path: flatten is layout-free because WWp is a multiple of the sublane pack
    f_flat = f_ref[...].reshape(TM * WWp, CF)
    f_contrib = jnp.dot(f_flat, wmf_ref[...],
                        preferred_element_type=jnp.float32).reshape(TM, WWp, CF)

    # store only the true window rows (dummy rows WW..WWp never reach HBM)
    out = f_contrib[:, :WW, :] + c_contrib[:, None, :]
    out_ref[...] = out.astype(out_ref.dtype)


# ----------------------------------------------------------------------------
# VMEM-aware tile selection (v5e/v6e: 128 MiB physical VMEM, v7x: 64 MiB)
# ----------------------------------------------------------------------------
def _pick_tile_m(R, WWp, WW, CF, CC, in_bytes, out_bytes):
    try:
        vmem_cap = int(pltpu.get_tpu_info().vmem_capacity_bytes)
    except Exception:
        vmem_cap = 64 << 20  # conservative: v7x physical VMEM per TensorCore

    # double-buffered streaming tiles + in-kernel f32 temporaries (matmul result + add)
    per_row = (2 * (WWp * CF + CC) * in_bytes      # f, c input double buffers
               + 2 * WW * CF * out_bytes           # output double buffer
               + 2 * WWp * CF * 4)                 # f32 matmul result / broadcast-add temp
    weight_bytes = 2 * ((CC * CF + CF * CF) * in_bytes + 2 * CF * 4)
    budget = min(vmem_cap // 2, 40 << 20)

    tile_cap = 8
    for cand in (512, 384, 256, 192, 128, 96, 64, 48, 32, 16, 8):
        if cand * per_row + weight_bytes <= budget:
            tile_cap = cand
            break
    if vmem_cap <= (64 << 20):
        tile_cap = min(tile_cap, 256)              # v7x hard cap (64 MiB physical VMEM)
    if R >= 32:
        # keep >= 4 grid steps: both v7x TensorCores get work and DMA stays pipelined
        tile_cap = min(tile_cap, max(8, _round_up(_cdiv(R, 4), 8)))

    # balance tiles so ragged last tiles don't waste ~a whole tile of work
    n_tiles = max(1, _cdiv(R, tile_cap))
    tile_m = min(tile_cap, _round_up(_cdiv(R, n_tiles), 8))

    est = tile_m * per_row + weight_bytes
    vmem_limit = max(32 << 20, est + (8 << 20))
    vmem_limit = min(vmem_limit, max(vmem_cap - (8 << 20), est + (4 << 20)))
    return tile_m, int(vmem_limit)


# ----------------------------------------------------------------------------
# Fused merge: one pallas_call per image (no concat before, no split after)
# ----------------------------------------------------------------------------
def _fused_merge(f_win, c_win, w_dc, wmf, b_dc, *, n_rows, ww, tile_m, vmem_limit,
                 out_dtype):
    """f_win: [R_pad, WWp, CF], c_win: [R_pad, CC]  ->  [n_rows, ww, CF]."""
    R_pad, WWp, CF = f_win.shape
    CC = c_win.shape[1]
    grid = (R_pad // tile_m,)
    # NOTE: stores are lane-dense only when CF % 128 == 0 (LoFTR default d_model_f=128);
    # other widths are correct but use masked lane stores.
    return pl.pallas_call(
        _fine_merge_kernel,
        out_shape=jax.ShapeDtypeStruct((n_rows, ww, CF), out_dtype),
        grid=grid,
        in_specs=[
            pl.BlockSpec((tile_m, WWp, CF), lambda i: (i, 0, 0)),   # fine windows
            pl.BlockSpec((tile_m, CC), lambda i: (i, 0)),           # coarse feats
            pl.BlockSpec((CC, CF), lambda i: (0, 0)),               # folded Wd@Wmc
            pl.BlockSpec((CF, CF), lambda i: (0, 0)),               # Wmf
            pl.BlockSpec((1, CF), lambda i: (0, 0)),                # folded bias
        ],
        # n_rows need not be a multiple of tile_m: the final block's out-of-bounds rows
        # are clipped by the pipeline, so no post-kernel slice pass is needed.
        out_specs=pl.BlockSpec((tile_m, ww, CF), lambda i: (i, 0, 0)),
        compiler_params=pltpu.CompilerParams(
            # TODO(synk): verify in a trace that "parallel" shards the row axis across
            # both v7x TensorCores; switch to pltpu.CORE_PARALLEL if it does not.
            dimension_semantics=("parallel",),
            vmem_limit_bytes=vmem_limit),
    )(f_win, c_win, w_dc, wmf, b_dc)


# ----------------------------------------------------------------------------
# JAX glue: gather windows straight into the kernel-ready layout (single pass)
# ----------------------------------------------------------------------------
def _prep_feature_map(feat_nchw, pad, dtype):
    """[N, C, H, W] -> [N, H+2p, W+2p, C]  (NHWC, zero-padded, compute dtype).
    One cheap pass over the feature map (~WW/stride^2 smaller than the window tensor)."""
    feat = jnp.transpose(feat_nchw, (0, 2, 3, 1)).astype(dtype)
    return jnp.pad(feat, ((0, 0), (pad, pad), (pad, pad), (0, 0)))


def _gather_windows_to(feat_pad_nhwc, b_ids, l_ids, W, stride, out_w, WWp, R_pad):
    """Gather W x W windows (plus WWp-WW dummy pixels and R_pad-M dummy rows) from a
    spatially padded NHWC map.  Returns [R_pad, WWp, C] already in the kernel's input
    layout/dtype; dummy rows/pixels are harmless because the kernel never stores them."""
    N, Hp, Wp, C = feat_pad_nhwc.shape
    M = b_ids.shape[0]
    WW = W * W
    r0 = (l_ids // out_w) * stride
    c0 = (l_ids % out_w) * stride
    dr = jnp.arange(W, dtype=l_ids.dtype)
    pix = ((r0[:, None, None] + dr[None, :, None]) * Wp
           + (c0[:, None, None] + dr[None, None, :])).reshape(M, WW)   # F.unfold order
    pix = jnp.pad(pix, ((0, R_pad - M), (0, WWp - WW)))                # dummies -> pixel 0
    b = jnp.pad(b_ids, (0, R_pad - M))
    flat = feat_pad_nhwc.reshape(N, Hp * Wp, C)
    return flat[b[:, None], pix, :]                                    # [R_pad, WWp, C]


def _gather_windows(feat_nchw, b_ids, l_ids, W, stride):
    """feat_nchw: [N, C, H, Wsp] -> [M, W*W, C] f32 windows (used only when
    fine_concat_coarse_feat is False, and by the self-check)."""
    N, C, H, Wsp = feat_nchw.shape
    pad = W // 2
    out_w = (Wsp + 2 * pad - W) // stride + 1
    feat = jnp.transpose(feat_nchw, (0, 2, 3, 1))
    feat = jnp.pad(feat, ((0, 0), (pad, pad), (pad, pad), (0, 0)))
    r0 = (l_ids // out_w) * stride
    c0 = (l_ids % out_w) * stride
    rows = r0[:, None] + jnp.arange(W)[None, :]
    cols = c0[:, None] + jnp.arange(W)[None, :]
    win = feat[b_ids[:, None, None], rows[:, :, None], cols[:, None, :], :]
    return win.reshape(b_ids.shape[0], W * W, C)


def _unfold_windows_ref(feat, W, stride):
    """Reference-only (demo check): full unfold, [N,C,H,W] -> [N, L, W*W, C]."""
    N, C, H, Wsp = feat.shape
    pad = W // 2
    out_h = (H + 2 * pad - W) // stride + 1
    out_w = (Wsp + 2 * pad - W) // stride + 1
    padded = jnp.pad(feat, ((0, 0), (0, 0), (pad, pad), (pad, pad)))
    row_idx = (jnp.arange(out_h) * stride)[:, None] + jnp.arange(W)[None, :]
    col_idx = (jnp.arange(out_w) * stride)[:, None] + jnp.arange(W)[None, :]
    patches = padded[:, :, row_idx[:, None, :, None], col_idx[None, :, None, :]]
    patches = jnp.transpose(patches, (0, 2, 3, 4, 5, 1))
    return patches.reshape(N, out_h * out_w, W * W, C)


# ----------------------------------------------------------------------------
# Module
# ----------------------------------------------------------------------------
class CascadeFinePreprocessPallas:
    def __init__(self, config, config_fine, config_coarse, coarse_level, key,
                 compute_dtype=jnp.bfloat16, out_dtype=jnp.float32):
        self.config = config
        self.cat_c_feat = config['fine_concat_coarse_feat']
        self.W = config['fine_window_size']
        self.coarse_level = coarse_level
        self.d_model_c = config_coarse['d_model']
        self.d_model_f = config_fine['d_model']
        self.compute_dtype = compute_dtype
        # Set out_dtype=jnp.bfloat16 if downstream fine attention runs in bf16: it halves
        # the kernel's dominant HBM stream (output writeback). Default f32 matches torch.
        self.out_dtype = out_dtype

        if self.cat_c_feat:
            dC, dF = self.d_model_c, self.d_model_f
            k1, k2, k3, k4 = jax.random.split(key, 4)
            # kaiming_normal_(mode='fan_out', relu) on [out,in] weights: std = sqrt(2/out)
            std = (2.0 / dF) ** 0.5
            # stored in "x @ W" ([in, out]) orientation
            self.wd = jax.random.normal(k1, (dC, dF), jnp.float32) * std      # down_proj W
            self.bd = jax.random.uniform(k3, (1, dF), jnp.float32,
                                         -1.0 / dC ** 0.5, 1.0 / dC ** 0.5)   # down_proj b
            wm = jax.random.normal(k2, (2 * dF, dF), jnp.float32) * std       # merge_feat W
            self.wmf = wm[:dF]          # fine-feature half
            self.wmc = wm[dF:]          # coarse-feature half
            self.bm = jax.random.uniform(k4, (1, dF), jnp.float32,
                                         -1.0 / (2 * dF) ** 0.5, 1.0 / (2 * dF) ** 0.5)
            # fold down_proj through merge_feat's coarse half (exact algebraic identity):
            #   (c @ Wd + bd) @ Wmc + bm  ==  c @ (Wd @ Wmc) + (bd @ Wmc + bm)
            # NOTE: folding in f32 then casting to bf16 is not bit-identical to running
            # the two matmuls separately in bf16; parity with torch is approximate.
            self.w_dc = self.wd @ self.wmc
            self.b_dc = (self.bd @ self.wmc + self.bm).astype(jnp.float32)
            self.w_dc_c = self.w_dc.astype(compute_dtype)
            self.wmf_c = self.wmf.astype(compute_dtype)

    def __call__(self, feat_f0, feat_f1, feat_c0, feat_c1, data):
        W = self.W
        lvl = self.coarse_level
        stride = data['hw0_f'][0] // data[f'hw0_{lvl}'][0]
        data['W'] = W
        st = data[f'stage_{lvl}']
        b_ids, i_ids, j_ids = st['b_ids'], st['i_ids'], st['j_ids']
        M = int(b_ids.shape[0])
        WW = W * W
        CF = self.d_model_f

        if M == 0:
            dt = self.out_dtype if self.cat_c_feat else feat_f0.dtype
            empty = jnp.zeros((0, WW, CF), dt)
            return empty, empty

        if not self.cat_c_feat:
            # no merge: return raw windows in the input dtype (matches the torch path)
            f0 = _gather_windows(feat_f0, b_ids, i_ids, W, stride)
            f1 = _gather_windows(feat_f1, b_ids, j_ids, W, stride)
            return f0, f1

        cd = self.compute_dtype
        CC = self.d_model_c
        in_bytes = jnp.dtype(cd).itemsize
        out_bytes = jnp.dtype(self.out_dtype).itemsize
        pad = W // 2
        out_w = (feat_f0.shape[3] + 2 * pad - W) // stride + 1
        # pad WW to the sublane pack of the compute dtype (25 -> 32 for bf16) so the
        # in-kernel flatten [TM,WWp,CF] -> [TM*WWp,CF] never needs a relayout copy
        WWp = _round_up(WW, max(8, 32 // in_bytes))

        tile_m, vmem_limit = _pick_tile_m(M, WWp, WW, CF, CC, in_bytes, out_bytes)
        R_pad = _round_up(M, tile_m)

        # single cheap pass over the (small) feature maps, then gather the big window
        # tensor exactly once, already in the kernel's dtype/layout (no f32 gather,
        # no separate cast/pad pass)
        f0_map = _prep_feature_map(feat_f0, pad, cd)
        f1_map = _prep_feature_map(feat_f1, pad, cd)
        f0_win = _gather_windows_to(f0_map, b_ids, i_ids, W, stride, out_w, WWp, R_pad)
        f1_win = _gather_windows_to(f1_map, b_ids, j_ids, W, stride, out_w, WWp, R_pad)

        b_p = jnp.pad(b_ids, (0, R_pad - M))
        c0_win = feat_c0[b_p, jnp.pad(i_ids, (0, R_pad - M))].astype(cd)   # [R_pad, CC]
        c1_win = feat_c1[b_p, jnp.pad(j_ids, (0, R_pad - M))].astype(cd)

        # one fused kernel per image: no [2M] concat, no output chunk/split passes
        feat0 = _fused_merge(f0_win, c0_win, self.w_dc_c, self.wmf_c, self.b_dc,
                             n_rows=M, ww=WW, tile_m=tile_m, vmem_limit=vmem_limit,
                             out_dtype=self.out_dtype)
        feat1 = _fused_merge(f1_win, c1_win, self.w_dc_c, self.wmf_c, self.b_dc,
                             n_rows=M, ww=WW, tile_m=tile_m, vmem_limit=vmem_limit,
                             out_dtype=self.out_dtype)
        return feat0, feat1


# ----------------------------------------------------------------------------
# Demo / self-check
# ----------------------------------------------------------------------------
if __name__ == "__main__":
    config = {'fine_concat_coarse_feat': True, 'fine_window_size': 5}
    config_fine = {'d_model': 128}     # lane-dense CF (LoFTR default)
    config_coarse = {'d_model': 256}
    coarse_level = 'c'

    key = jax.random.PRNGKey(0)
    kp, k0, k1, k2, k3, kb, ki, kj = jax.random.split(key, 8)

    N, Cf, Cc = 2, config_fine['d_model'], config_coarse['d_model']
    Hf = Wf = 16
    Hc = Wc = 8          # stride = 2
    L = Hc * Wc
    M = 6                # number of matches (exercises the ragged last output block)

    feat_f0 = jax.random.normal(k0, (N, Cf, Hf, Wf), jnp.float32)
    feat_f1 = jax.random.normal(k1, (N, Cf, Hf, Wf), jnp.float32)
    feat_c0 = jax.random.normal(k2, (N, L, Cc), jnp.float32)
    feat_c1 = jax.random.normal(k3, (N, L, Cc), jnp.float32)

    data = {
        'hw0_f': (Hf, Wf),
        'hw0_c': (Hc, Wc),
        'stage_c': {
            'b_ids': jax.random.randint(kb, (M,), 0, N),
            'i_ids': jax.random.randint(ki, (M,), 0, L),
            'j_ids': jax.random.randint(kj, (M,), 0, L),
        },
    }

    mod = CascadeFinePreprocessPallas(config, config_fine, config_coarse, coarse_level, kp)
    feat0, feat1 = mod(feat_f0, feat_f1, feat_c0, feat_c1, data)
    jax.block_until_ready((feat0, feat1))

    # ---------------- reference checks ----------------
    W = config['fine_window_size']
    WW = W * W
    stride = Hf // Hc
    b_ids = data['stage_c']['b_ids']
    i_ids = data['stage_c']['i_ids']
    j_ids = data['stage_c']['j_ids']

    # (1) window gather matches the full-unfold reference exactly (f32 helper)
    f0_all = _unfold_windows_ref(feat_f0, W, stride)
    f1_all = _unfold_windows_ref(feat_f1, W, stride)
    f_win_ref = jnp.concatenate([f0_all[b_ids, i_ids], f1_all[b_ids, j_ids]], 0)
    f_win_glue = jnp.concatenate([_gather_windows(feat_f0, b_ids, i_ids, W, stride),
                                  _gather_windows(feat_f1, b_ids, j_ids, W, stride)], 0)
    assert jnp.allclose(f_win_glue, f_win_ref, atol=1e-6)

    # (1b) the kernel-layout bf16 gather matches too (window-pixel ordering, values)
    cd = mod.compute_dtype
    pad = W // 2
    out_w = (Wf + 2 * pad - W) // stride + 1
    g0 = _gather_windows_to(_prep_feature_map(feat_f0, pad, cd),
                            b_ids, i_ids, W, stride, out_w, WW, M)
    assert jnp.allclose(g0.astype(jnp.float32),
                        f0_all[b_ids, i_ids].astype(cd).astype(jnp.float32))

    c_win_ref = jnp.concatenate([feat_c0[b_ids, i_ids], feat_c1[b_ids, j_ids]], 0)
    out_full = jnp.concatenate([feat0, feat1], 0).astype(jnp.float32)

    # (2) precision-matched reference of the fused kernel math (same bf16 inputs)
    f_b = f_win_ref.astype(cd).astype(jnp.float32)
    c_b = c_win_ref.astype(cd).astype(jnp.float32)
    wdc_b = mod.w_dc.astype(cd).astype(jnp.float32)
    wmf_b = mod.wmf.astype(cd).astype(jnp.float32)
    ref_matched = (jnp.einsum('mwc,cd->mwd', f_b, wmf_b)
                   + (c_b @ wdc_b + mod.b_dc)[:, None, :])
    assert jnp.allclose(out_full, ref_matched, atol=1e-2, rtol=1e-2)

    # (3) semantic reference: original unfused f32 path (loose, covers bf16 rounding)
    c_proj = c_win_ref @ mod.wd + mod.bd
    merged_in = jnp.concatenate(
        [f_win_ref, jnp.broadcast_to(c_proj[:, None, :], f_win_ref.shape)], -1)
    wm_full = jnp.concatenate([mod.wmf, mod.wmc], 0)
    ref_f32 = merged_in @ wm_full + mod.bm
    assert float(jnp.max(jnp.abs(out_full - ref_f32))) < 0.3

    assert feat0.shape == (M, WW, Cf) and feat1.shape == (M, WW, Cf)
    print("KERNEL_OK")
</pallas_src>

<mosaic_0001>
module attributes {stable_mosaic.version = 11 : i64} {
  func.func @_fine_merge_kernel(%arg0: i32, %arg1: memref<8x32x128xbf16, #tpu.memory_space<vmem>>, %arg2: memref<8x256xbf16, #tpu.memory_space<vmem>>, %arg3: memref<256x128xbf16, #tpu.memory_space<vmem>>, %arg4: memref<128x128xbf16, #tpu.memory_space<vmem>>, %arg5: memref<1x128xf32, #tpu.memory_space<vmem>>, %arg6: memref<8x25x128xf32, #tpu.memory_space<vmem>>) attributes {dimension_semantics = [#tpu.dimension_semantics<parallel>], iteration_bounds = array<i64: 1>, scalar_prefetch = 0 : i64, scratch_operands = 0 : i64, tpu.core_type = #tpu.core_type<tc>, window_params = [{transform_indices = @transform_0, window_bounds = array<i64: 8, 32, 128>}, {transform_indices = @transform_1, window_bounds = array<i64: 8, 256>}, {pipeline_mode = #tpu.pipeline_mode<synchronous>, transform_indices = @transform_2, window_bounds = array<i64: 256, 128>}, {pipeline_mode = #tpu.pipeline_mode<synchronous>, transform_indices = @transform_3, window_bounds = array<i64: 128, 128>}, {pipeline_mode = #tpu.pipeline_mode<synchronous>, transform_indices = @transform_4, window_bounds = array<i64: 1, 128>}, {transform_indices = @transform_5, window_bounds = array<i64: 8, 25, 128>}]} {
    %c0 = arith.constant 0 : index
    %c0_0 = arith.constant 0 : index
    %0 = vector.load %arg2[%c0, %c0_0] : memref<8x256xbf16, #tpu.memory_space<vmem>>, vector<8x256xbf16>
    %c0_1 = arith.constant 0 : index
    %c0_2 = arith.constant 0 : index
    %1 = vector.load %arg3[%c0_1, %c0_2] : memref<256x128xbf16, #tpu.memory_space<vmem>>, vector<256x128xbf16>
    %cst = arith.constant dense<0.000000e+00> : vector<8x128xf32>
    %2 = tpu.matmul %0, %1, %cst {dimension_numbers = #tpu.dot_dimension_numbers<[1], [0], [0], [1], [0, 0, 1, 1], [], []>} : vector<8x256xbf16>, vector<256x128xbf16>, vector<8x128xf32> -> vector<8x128xf32>
    %c0_3 = arith.constant 0 : index
    %c0_4 = arith.constant 0 : index
    %3 = vector.load %arg5[%c0_3, %c0_4] : memref<1x128xf32, #tpu.memory_space<vmem>>, vector<1x128xf32>
    %4 = vector.broadcast %3 : vector<1x128xf32> to vector<8x128xf32>
    %5 = arith.addf %2, %4 : vector<8x128xf32>
    %c0_5 = arith.constant 0 : index
    %c0_6 = arith.constant 0 : index
    %c0_7 = arith.constant 0 : index
    %6 = vector.load %arg1[%c0_5, %c0_6, %c0_7] : memref<8x32x128xbf16, #tpu.memory_space<vmem>>, vector<8x32x128xbf16>
    %7 = vector.shape_cast %6 : vector<8x32x128xbf16> to vector<256x128xbf16>
    %c0_8 = arith.constant 0 : index
    %c0_9 = arith.constant 0 : index
    %8 = vector.load %arg4[%c0_8, %c0_9] : memref<128x128xbf16, #tpu.memory_space<vmem>>, vector<128x128xbf16>
    %cst_10 = arith.constant dense<0.000000e+00> : vector<256x128xf32>
    %9 = tpu.matmul %7, %8, %cst_10 {dimension_numbers = #tpu.dot_dimension_numbers<[1], [0], [0], [1], [0, 0, 1, 1], [], []>} : vector<256x128xbf16>, vector<128x128xbf16>, vector<256x128xf32> -> vector<256x128xf32>
    %10 = vector.shape_cast %9 : vector<256x128xf32> to vector<8x32x128xf32>
    %11 = vector.extract_strided_slice %10 {offsets = [0, 0, 0], sizes = [8, 25, 128], strides = [1, 1, 1]} : vector<8x32x128xf32> to vector<8x25x128xf32>
    %12 = vector.shape_cast %5 : vector<8x128xf32> to vector<8x1x128xf32>
    %13 = vector.broadcast %12 : vector<8x1x128xf32> to vector<8x25x128xf32>
    %14 = arith.addf %11, %13 : vector<8x25x128xf32>
    %c0_11 = arith.constant 0 : index
    %c0_12 = arith.constant 0 : index
    %c0_13 = arith.constant 0 : index
    %15 = vector.load %arg6[%c0_11, %c0_12, %c0_13] : memref<8x25x128xf32, #tpu.memory_space<vmem>>, vector<8x25x128xf32>
    tpu.vector_store %arg6[%c0_11, %c0_12, %c0_13], %14 {strides = array<i32>} : memref<8x25x128xf32, #tpu.memory_space<vmem>>, vector<8x25x128xf32>,
    return
  }
  func.func @transform_0(%arg0: i32) -> (i32, i32, i32) {
    %c0_i32 = arith.constant 0 : i32
    %c0_i32_0 = arith.constant 0 : i32
    %c0_i32_1 = arith.constant 0 : i32
    return %arg0, %c0_i32, %c0_i32_0 : i32, i32, i32
  }
  func.func @transform_1(%arg0: i32) -> (i32, i32) {
    %c0_i32 = arith.constant 0 : i32
    %c0_i32_0 = arith.constant 0 : i32
    return %arg0, %c0_i32 : i32, i32
  }
  func.func @transform_2(%arg0: i32) -> (i32, i32) {
    %c0_i32 = arith.constant 0 : i32
    %c0_i32_0 = arith.constant 0 : i32
    %c0_i32_1 = arith.constant 0 : i32
    return %c0_i32, %c0_i32_0 : i32, i32
  }
  func.func @transform_3(%arg0: i32) -> (i32, i32) {
    %c0_i32 = arith.constant 0 : i32
    %c0_i32_0 = arith.constant 0 : i32
    %c0_i32_1 = arith.constant 0 : i32
    return %c0_i32, %c0_i32_0 : i32, i32
  }
  func.func @transform_4(%arg0: i32) -> (i32, i32) {
    %c0_i32 = arith.constant 0 : i32
    %c0_i32_0 = arith.constant 0 : i32
    %c0_i32_1 = arith.constant 0 : i32
    return %c0_i32, %c0_i32_0 : i32, i32
  }
  func.func @transform_5(%arg0: i32) -> (i32, i32, i32) {
    %c0_i32 = arith.constant 0 : i32
    %c0_i32_0 = arith.constant 0 : i32
    %c0_i32_1 = arith.constant 0 : i32
    return %arg0, %c0_i32, %c0_i32_0 : i32, i32, i32
  }
}

</mosaic_0001>

<llo_original>
// kernel: tpu_custom_call.1
$region0: #{tpu_custom_call.1}
  #allocation0 [shape = 'u32[]', space=smem, size = 0x4, offset = 0x4, fixed_abs, tag = 'smem constant byte address 0x4 - core index']
  #allocation1 [shape = 'u32[72,128]{1,0:T(1,128)}', space=vmem, size = 0x9000, scoped, tag = 'internal scratch']
  %s0 = inlined_call_operand.hbm [shape: bf16[8,32,128], index: 0, kind: input, shape index: {}]
  %s1 = inlined_call_operand.hbm [shape: bf16[8,256], index: 1, kind: input, shape index: {}]
  %s2 = inlined_call_operand.hbm [shape: bf16[256,128], index: 2, kind: input, shape index: {}]
  %s3 = inlined_call_operand.hbm [shape: bf16[128,128], index: 3, kind: input, shape index: {}]
  %s4 = inlined_call_operand.vmem [shape: f32[1,128], index: 4, kind: input, shape index: {}]
  %s5 = inlined_call_operand.hbm [shape: f32[6,25,128], index: 5, kind: output, shape index: {}]
  %s6 = sld [smem:[#allocation0]]
  $region46: #{tpu_custom_call.1} parent=0
    _
  %s8 = ssub.s32 1, %s6
  %s9 = scalar_select 0, %s8, %s6
  $region1: #{tpu_custom_call.1} parent=0
    #allocation2 [shape = 'u8[65536]{0}', space=vmem, size = 0x10000, scoped, tag = 'input window, operand 0, single buffered']
    #allocation3 [shape = 's32[1]{0}', space=sflag, size = 0x4, scoped, tag = 'scoped memory for tpu_custom_call.1']
    #allocation4 [shape = 's32[1]{0}', space=sflag, size = 0x4, scoped, tag = 'scoped memory for tpu_custom_call.1']
    #allocation5 [shape = 'u8[4096]{0}', space=vmem, size = 0x1000, scoped, tag = 'input window, operand 1, single buffered']
    #allocation6 [shape = 's32[1]{0}', space=sflag, size = 0x4, scoped, tag = 'scoped memory for tpu_custom_call.1']
    #allocation7 [shape = 'u8[65536]{0}', space=vmem, size = 0x10000, scoped, tag = 'input window, operand 2, single buffered']
    #allocation8 [shape = 'u8[32768]{0}', space=vmem, size = 0x8000, scoped, tag = 'input window, operand 3, single buffered']
    #allocation9 [shape = 's32[1]{0}', space=sflag, size = 0x4, scoped, tag = 'scoped memory for tpu_custom_call.1']
    #allocation10 [shape = 'u8[131072]{0}', space=vmem, size = 0x20000, scoped, tag = 'output window, operand 0, single buffered']
    %10 = vsyncpa [#allocation3], 0
    %11 = vsyncpa [#allocation6], 0
    %12 = vsyncpa [#allocation9], 0
    %13 = vsyncpa [#allocation4], 0
    // Predicated region
    $region2: #{tpu_custom_call.1} parent=1 // pred_check
      _
    $region3: #{tpu_custom_call.1} parent=1 // pred_check_branch
      %15 = sbr.rel (0) target = $region5
    $region4: #{tpu_custom_call.1} parent=1 // pred_region
      %17 = vsyncadd [#allocation3], 0
      %s18 = sshll.u32 %s0, 4
      %s19 = int_to_ptr.hbm [resolvable:$true] %s18
      %s20 = sshll.u32 [#allocation2], 4
      %s21 = int_to_ptr.vmem [resolvable:$true] %s20
      %26 = dma.hbm_to_vmem [thread:$0]  %s19, 2048, %s21, [#allocation3], 64, 64, 4
    $region5: #{tpu_custom_call.1} parent=1 // pred_fallthru
      _
    // Predicated region
    $region6: #{tpu_custom_call.1} parent=1 // pred_check
      _
    $region7: #{tpu_custom_call.1} parent=1 // pred_check_branch
      %28 = sbr.rel (0) target = $region9
    $region8: #{tpu_custom_call.1} parent=1 // pred_region
      %30 = vsyncadd [#allocation6], 0
      %s32 = sshll.u32 %s1, 4
      %s33 = int_to_ptr.hbm [resolvable:$true] %s32
      %s34 = sshll.u32 [#allocation5], 4
      %s35 = int_to_ptr.vmem [resolvable:$true] %s34
      %37 = dma.hbm_to_vmem [thread:$0]  %s33, 128, %s35, [#allocation6]
    $region9: #{tpu_custom_call.1} parent=1 // pred_fallthru
      _
    // Predicated region
    $region10: #{tpu_custom_call.1} parent=1 // pred_check
      _
    $region11: #{tpu_custom_call.1} parent=1 // pred_check_branch
      %39 = sbr.rel (0) target = $region13
    $region12: #{tpu_custom_call.1} parent=1 // pred_region
      %41 = vsyncadd [#allocation6], 0
      %s42 = sshll.u32 %s2, 4
      %s43 = int_to_ptr.hbm [resolvable:$true] %s42
      %s44 = sshll.u32 [#allocation7], 4
      %s45 = int_to_ptr.vmem [resolvable:$true] %s44
      %50 = dma.hbm_to_vmem [thread:$0]  %s43, 2048, %s45, [#allocation6], 64, 64, 4
    $region13: #{tpu_custom_call.1} parent=1 // pred_fallthru
      _
    // Predicated region
    $region14: #{tpu_custom_call.1} parent=1 // pred_check
      _
    $region15: #{tpu_custom_call.1} parent=1 // pred_check_branch
      %52 = sbr.rel (0) target = $region17
    $region16: #{tpu_custom_call.1} parent=1 // pred_region
      %54 = vsyncadd [#allocation9], 0
      %s55 = sshll.u32 %s3, 4
      %s56 = int_to_ptr.hbm [resolvable:$true] %s55
      %s57 = sshll.u32 [#allocation8], 4
      %s58 = int_to_ptr.vmem [resolvable:$true] %s57
      %63 = dma.hbm_to_vmem [thread:$0]  %s56, 1024, %s58, [#allocation9], 64, 64, 4
    $region17: #{tpu_custom_call.1} parent=1 // pred_fallthru
      _
    // Predicated region
    $region18: #{tpu_custom_call.1} parent=1 // pred_check
      _
    $region19: #{tpu_custom_call.1} parent=1 // pred_check_branch
      %65 = sbr.rel (0) target = $region21
    $region20: #{tpu_custom_call.1} parent=1 // pred_region
      _
    $region21: #{tpu_custom_call.1} parent=1 // pred_fallthru
      _
    // Predicated region
    $region22: #{tpu_custom_call.1} parent=1 // pred_check
      _
    $region23: #{tpu_custom_call.1} parent=1 // pred_check_branch
      %67 = sbr.rel (0) target = $region25
    $region24: #{tpu_custom_call.1} parent=1 // pred_region
      %69 = dma.done [#allocation3], 2048
    $region25: #{tpu_custom_call.1} parent=1 // pred_fallthru
      _
    // Predicated region
    $region26: #{tpu_custom_call.1} parent=1 // pred_check
      _
    $region27: #{tpu_custom_call.1} parent=1 // pred_check_branch
      %71 = sbr.rel (0) target = $region29
    $region28: #{tpu_custom_call.1} parent=1 // pred_region
      %73 = dma.done [#allocation6], 128
    $region29: #{tpu_custom_call.1} parent=1 // pred_fallthru
      _
    // Predicated region
    $region30: #{tpu_custom_call.1} parent=1 // pred_check
      _
    $region31: #{tpu_custom_call.1} parent=1 // pred_check_branch
      %75 = sbr.rel (0) target = $region33
    $region32: #{tpu_custom_call.1} parent=1 // pred_region
      %77 = dma.done [#allocation6], 2048
    $region33: #{tpu_custom_call.1} parent=1 // pred_fallthru
      _
    // Predicated region
    $region34: #{tpu_custom_call.1} parent=1 // pred_check
      _
    $region35: #{tpu_custom_call.1} parent=1 // pred_check_branch
      %79 = sbr.rel (0) target = $region37
    $region36: #{tpu_custom_call.1} parent=1 // pred_region
      %81 = dma.done [#allocation9], 1024
    $region37: #{tpu_custom_call.1} parent=1 // pred_fallthru
      _
    %v82 = vld [vmem:[#allocation5] sm:$0xff]
    %v83 = vld [vmem:[#allocation7] sm:$0xf]
    %v84 = vld [vmem:[#allocation7 + $0x4] sm:$0xf]
    %v85 = vld [vmem:[#allocation7 + $0x8] sm:$0xf]
    %v86 = vld [vmem:[#allocation7 + $0xc] sm:$0xf]
    %v87 = vld [vmem:[#allocation7 + $0x10] sm:$0xf]
    %v88 = vld [vmem:[#allocation7 + $0x14] sm:$0xf]
    %v89 = vld [vmem:[#allocation7 + $0x18] sm:$0xf]
    %v90 = vld [vmem:[#allocation7 + $0x1c] sm:$0xf]
    %v91 = vld [vmem:[#allocation7 + $0x20] sm:$0xf]
    %v92 = vld [vmem:[#allocation7 + $0x24] sm:$0xf]
    %v93 = vld [vmem:[#allocation7 + $0x28] sm:$0xf]
    %v94 = vld [vmem:[#allocation7 + $0x2c] sm:$0xf]
    %v95 = vld [vmem:[#allocation7 + $0x30] sm:$0xf]
    %v96 = vld [vmem:[#allocation7 + $0x34] sm:$0xf]
    %v97 = vld [vmem:[#allocation7 + $0x38] sm:$0xf]
    %v98 = vld [vmem:[#allocation7 + $0x3c] sm:$0xf]
    %v99 = vld [vmem:[#allocation7 + $0x40] sm:$0xf]
    %v100 = vld [vmem:[#allocation7 + $0x44] sm:$0xf]
    %v101 = vld [vmem:[#allocation7 + $0x48] sm:$0xf]
    %v102 = vld [vmem:[#allocation7 + $0x4c] sm:$0xf]
    %v103 = vld [vmem:[#allocation7 + $0x50] sm:$0xf]
    %v104 = vld [vmem:[#allocation7 + $0x54] sm:$0xf]
    %v105 = vld [vmem:[#allocation7 + $0x58] sm:$0xf]
    %v106 = vld [vmem:[#allocation7 + $0x5c] sm:$0xf]
    %v107 = vld [vmem:[#allocation7 + $0x60] sm:$0xf]
    %v108 = vld [vmem:[#allocation7 + $0x64] sm:$0xf]
    %v109 = vld [vmem:[#allocation7 + $0x68] sm:$0xf]
    %v110 = vld [vmem:[#allocation7 + $0x6c] sm:$0xf]
    %v111 = vld [vmem:[#allocation7 + $0x70] sm:$0xf]
    %v112 = vld [vmem:[#allocation7 + $0x74] sm:$0xf]
    %v113 = vld [vmem:[#allocation7 + $0x78] sm:$0xf]
    %v114 = vld [vmem:[#allocation7 + $0x7c] sm:$0xf]
    %v115 = vld [vmem:[%s4] sm:$0x1]
    %v117 = vperm.slane %v115, 0
    %v120 = vunpack.c.l.b16 %v82
    %v121 = vunpack.c.h.b16 %v82
    %v122 = vpack.c.b16 %v120, %v120
    %v123 = vpack.c.b16 %v121, %v121
    %v158 = vunpack.c.l.b16 %v83
    %v159 = vunpack.c.l.b16 %v84
    %v160 = vunpack.c.l.b16 %v85
    %v161 = vunpack.c.l.b16 %v86
    %v162 = vunpack.c.l.b16 %v87
    %v163 = vunpack.c.l.b16 %v88
    %v164 = vunpack.c.l.b16 %v89
    %v165 = vunpack.c.l.b16 %v90
    %v166 = vunpack.c.l.b16 %v91
    %v167 = vunpack.c.l.b16 %v92
    %v168 = vunpack.c.l.b16 %v93
    %v169 = vunpack.c.l.b16 %v94
    %v170 = vunpack.c.l.b16 %v95
    %v171 = vunpack.c.l.b16 %v96
    %v172 = vunpack.c.l.b16 %v97
    %v173 = vunpack.c.l.b16 %v98
    %v174 = vunpack.c.l.b16 %v99
    %v175 = vunpack.c.l.b16 %v100
    %v176 = vunpack.c.l.b16 %v101
    %v177 = vunpack.c.l.b16 %v102
    %v178 = vunpack.c.l.b16 %v103
    %v179 = vunpack.c.l.b16 %v104
    %v180 = vunpack.c.l.b16 %v105
    %v181 = vunpack.c.l.b16 %v106
    %v182 = vunpack.c.l.b16 %v107
    %v183 = vunpack.c.l.b16 %v108
    %v184 = vunpack.c.l.b16 %v109
    %v185 = vunpack.c.l.b16 %v110
    %v186 = vunpack.c.l.b16 %v111
    %v187 = vunpack.c.l.b16 %v112
    %v188 = vunpack.c.l.b16 %v113
    %v189 = vunpack.c.l.b16 %v114
    %v190 = vpack.c.b16 %v159, %v158
    %v191 = vpack.c.b16 %v161, %v160
    %v192 = vpack.c.b16 %v163, %v162
    %v193 = vpack.c.b16 %v165, %v164
    %v194 = vpack.c.b16 %v167, %v166
    %v195 = vpack.c.b16 %v169, %v168
    %v196 = vpack.c.b16 %v171, %v170
    %v197 = vpack.c.b16 %v173, %v172
    %v198 = vpack.c.b16 %v175, %v174
    %v199 = vpack.c.b16 %v177, %v176
    %v200 = vpack.c.b16 %v179, %v178
    %v201 = vpack.c.b16 %v181, %v180
    %v202 = vpack.c.b16 %v183, %v182
    %v203 = vpack.c.b16 %v185, %v184
    %v204 = vpack.c.b16 %v187, %v186
    %v205 = vpack.c.b16 %v189, %v188
    %222 = vmatpush.bf16.msra.mxu0 %v197
    %223 = vmatpush.bf16.msra.mxu0 %v196
    %224 = vmatpush.bf16.msra.mxu0 %v195
    %225 = vmatpush.bf16.msra.mxu0 %v194
    %226 = vmatpush.bf16.msra.mxu0 %v193
    %227 = vmatpush.bf16.msra.mxu0 %v192
    %228 = vmatpush.bf16.msra.mxu0 %v191
    %229 = vmatpush.bf16.msra.mxu0 %v190
    %230 = vmatmul.bf16.gmra.mxu0 %v122
    %v231 = vpop.f32.mrf.mxu0
    %v232 = vadd.f32 %v117, %v231
    %v233 = vpop.f32.mrf.mxu0
    %234 = vdwg.mxu0
    %235 = vmatpush.bf16.msra.mxu0 %v205
    %236 = vmatpush.bf16.msra.mxu0 %v204
    %237 = vmatpush.bf16.msra.mxu0 %v203
    %238 = vmatpush.bf16.msra.mxu0 %v202
    %239 = vmatpush.bf16.msra.mxu0 %v201
    %240 = vmatpush.bf16.msra.mxu0 %v200
    %241 = vmatpush.bf16.msra.mxu0 %v199
    %242 = vmatpush.bf16.msra.mxu0 %v198
    %243 = vmatmul.bf16.gmra.mxu0 %v123
    %v244 = vpop.f32.mrf.mxu0
    %v245 = vadd.f32 %v232, %v244
    %v246 = vpop.f32.mrf.mxu0
    %247 = vdwg.mxu0
    %v248 = vld [vmem:[#allocation2] sm:$0xf]
    %v249 = vld [vmem:[#allocation2 + $0x4] sm:$0xf]
    %v250 = vld [vmem:[#allocation2 + $0x8] sm:$0xf]
    %v251 = vld [vmem:[#allocation2 + $0xc] sm:$0xf]
    %v252 = vld [vmem:[#allocation2 + $0x10] sm:$0xf]
    %v253 = vld [vmem:[#allocation2 + $0x14] sm:$0xf]
    %v254 = vld [vmem:[#allocation2 + $0x18] sm:$0xf]
    %v255 = vld [vmem:[#allocation2 + $0x1c] sm:$0xf]
    %v256 = vld [vmem:[#allocation2 + $0x20] sm:$0xf]
    %v257 = vld [vmem:[#allocation2 + $0x24] sm:$0xf]
    %v258 = vld [vmem:[#allocation2 + $0x28] sm:$0xf]
    %v259 = vld [vmem:[#allocation2 + $0x2c] sm:$0xf]
    %v260 = vld [vmem:[#allocation2 + $0x30] sm:$0xf]
    %v261 = vld [vmem:[#allocation2 + $0x34] sm:$0xf]
    %v262 = vld [vmem:[#allocation2 + $0x38] sm:$0xf]
    %v263 = vld [vmem:[#allocation2 + $0x3c] sm:$0xf]
    %v264 = vld [vmem:[#allocation2 + $0x40] sm:$0xf]
    %v265 = vld [vmem:[#allocation2 + $0x44] sm:$0xf]
    %v266 = vld [vmem:[#allocation2 + $0x48] sm:$0xf]
    %v267 = vld [vmem:[#allocation2 + $0x4c] sm:$0xf]
    %v268 = vld [vmem:[#allocation2 + $0x50] sm:$0xf]
    %v269 = vld [vmem:[#allocation2 + $0x54] sm:$0xf]
    %v270 = vld [vmem:[#allocation2 + $0x58] sm:$0xf]
    %v271 = vld [vmem:[#allocation2 + $0x5c] sm:$0xf]
    %v272 = vld [vmem:[#allocation2 + $0x60] sm:$0xf]
    %v273 = vld [vmem:[#allocation2 + $0x64] sm:$0xf]
    %v274 = vld [vmem:[#allocation2 + $0x68] sm:$0xf]
    %v275 = vld [vmem:[#allocation2 + $0x6c] sm:$0xf]
    %v276 = vld [vmem:[#allocation2 + $0x70] sm:$0xf]
    %v277 = vld [vmem:[#allocation2 + $0x74] sm:$0xf]
    %v278 = vld [vmem:[#allocation2 + $0x78] sm:$0xf]
    %v279 = vld [vmem:[#allocation2 + $0x7c] sm:$0xf]
    %v280 = vld [vmem:[#allocation8] sm:$0xf]
    %v281 = vld [vmem:[#allocation8 + $0x4] sm:$0xf]
    %v282 = vld [vmem:[#allocation8 + $0x8] sm:$0xf]
    %v283 = vld [vmem:[#allocation8 + $0xc] sm:$0xf]
    %v284 = vld [vmem:[#allocation8 + $0x10] sm:$0xf]
    %v285 = vld [vmem:[#allocation8 + $0x14] sm:$0xf]
    %v286 = vld [vmem:[#allocation8 + $0x18] sm:$0xf]
    %v287 = vld [vmem:[#allocation8 + $0x1c] sm:$0xf]
    %v288 = vld [vmem:[#allocation8 + $0x20] sm:$0xf]
    %v289 = vld [vmem:[#allocation8 + $0x24] sm:$0xf]
    %v290 = vld [vmem:[#allocation8 + $0x28] sm:$0xf]
    %v291 = vld [vmem:[#allocation8 + $0x2c] sm:$0xf]
    %v292 = vld [vmem:[#allocation8 + $0x30] sm:$0xf]
    %v293 = vld [vmem:[#allocation8 + $0x34] sm:$0xf]
    %v294 = vld [vmem:[#allocation8 + $0x38] sm:$0xf]
    %v295 = vld [vmem:[#allocation8 + $0x3c] sm:$0xf]
    %v328 = vunpack.c.l.b16 %v248
    %v329 = vunpack.c.l.b16 %v249
    %v330 = vunpack.c.l.b16 %v250
    %v331 = vunpack.c.l.b16 %v251
    %v332 = vunpack.c.l.b16 %v252
    %v333 = vunpack.c.l.b16 %v253
    %v334 = vunpack.c.l.b16 %v254
    %v335 = vunpack.c.l.b16 %v255
    %v336 = vunpack.c.l.b16 %v256
    %v337 = vunpack.c.l.b16 %v257
    %v338 = vunpack.c.l.b16 %v258
    %v339 = vunpack.c.l.b16 %v259
    %v340 = vunpack.c.l.b16 %v260
    %v341 = vunpack.c.l.b16 %v261
    %v342 = vunpack.c.l.b16 %v262
    %v343 = vunpack.c.l.b16 %v263
    %v344 = vunpack.c.l.b16 %v264
    %v345 = vunpack.c.l.b16 %v265
    %v346 = vunpack.c.l.b16 %v266
    %v347 = vunpack.c.l.b16 %v267
    %v348 = vunpack.c.l.b16 %v268
    %v349 = vunpack.c.l.b16 %v269
    %v350 = vunpack.c.l.b16 %v270
    %v351 = vunpack.c.l.b16 %v271
    %v352 = vunpack.c.l.b16 %v272
    %v353 = vunpack.c.l.b16 %v273
    %v354 = vunpack.c.l.b16 %v274
    %v355 = vunpack.c.l.b16 %v275
    %v356 = vunpack.c.l.b16 %v276
    %v357 = vunpack.c.l.b16 %v277
    %v358 = vunpack.c.l.b16 %v278
    %v359 = vunpack.c.l.b16 %v279
    %v360 = vpack.c.b16 %v329, %v328
    %v361 = vpack.c.b16 %v331, %v330
    %v362 = vpack.c.b16 %v333, %v332
    %v363 = vpack.c.b16 %v335, %v334
    %v364 = vpack.c.b16 %v337, %v336
    %v365 = vpack.c.b16 %v339, %v338
    %v366 = vpack.c.b16 %v341, %v340
    %v367 = vpack.c.b16 %v343, %v342
    %v368 = vpack.c.b16 %v345, %v344
    %v369 = vpack.c.b16 %v347, %v346
    %v370 = vpack.c.b16 %v349, %v348
    %v371 = vpack.c.b16 %v351, %v350
    %v372 = vpack.c.b16 %v353, %v352
    %v373 = vpack.c.b16 %v355, %v354
    %v374 = vpack.c.b16 %v357, %v356
    %v375 = vpack.c.b16 %v359, %v358
    %v408 = vunpack.c.l.b16 %v280
    %v409 = vunpack.c.l.b16 %v281
    %v410 = vunpack.c.l.b16 %v282
    %v411 = vunpack.c.l.b16 %v283
    %v412 = vunpack.c.l.b16 %v284
    %v413 = vunpack.c.l.b16 %v285
    %v414 = vunpack.c.l.b16 %v286
    %v415 = vunpack.c.l.b16 %v287
    %v416 = vunpack.c.l.b16 %v288
    %v417 = vunpack.c.l.b16 %v289
    %v418 = vunpack.c.l.b16 %v290
    %v419 = vunpack.c.l.b16 %v291
    %v420 = vunpack.c.l.b16 %v292
    %v421 = vunpack.c.l.b16 %v293
    %v422 = vunpack.c.l.b16 %v294
    %v423 = vunpack.c.l.b16 %v295
    %v424 = vpack.c.b16 %v409, %v408
    %v425 = vpack.c.b16 %v411, %v410
    %v426 = vpack.c.b16 %v413, %v412
    %v427 = vpack.c.b16 %v415, %v414
    %v428 = vpack.c.b16 %v417, %v416
    %v429 = vpack.c.b16 %v419, %v418
    %v430 = vpack.c.b16 %v421, %v420
    %v431 = vpack.c.b16 %v423, %v422
    %440 = vmatpush.bf16.msra.mxu0 %v431
    %441 = vmatpush.bf16.msra.mxu0 %v430
    %442 = vmatpush.bf16.msra.mxu0 %v429
    %443 = vmatpush.bf16.msra.mxu0 %v428
    %444 = vmatpush.bf16.msra.mxu0 %v427
    %445 = vmatpush.bf16.msra.mxu0 %v426
    %446 = vmatpush.bf16.msra.mxu0 %v425
    %447 = vmatpush.bf16.msra.mxu0 %v424
    %448 = vmatmul.bf16.gmra.mxu0 %v360
    %v449 = vpop.f32.mrf.mxu0
    %v450 = vadd.f32 0.0, %v449
    %v451 = vpop.f32.mrf.mxu0
    %v452 = vadd.f32 0.0, %v451
    %453 = vmatmul.bf16.gmra.mxu0 %v361
    %v454 = vpop.f32.mrf.mxu0
    %v455 = vadd.f32 0.0, %v454
    %v456 = vpop.f32.mrf.mxu0
    %v457 = vadd.f32 0.0, %v456
    %458 = vmatmul.bf16.gmra.mxu0 %v362
    %v459 = vpop.f32.mrf.mxu0
    %v460 = vadd.f32 0.0, %v459
    %v461 = vpop.f32.mrf.mxu0
    %v462 = vadd.f32 0.0, %v461
    %463 = vmatmul.bf16.gmra.mxu0 %v363
    %v464 = vpop.f32.mrf.mxu0
    %v465 = vadd.f32 0.0, %v464
    %v466 = vpop.f32.mrf.mxu0
    %v467 = vadd.f32 0.0, %v466
    %468 = vmatmul.bf16.gmra.mxu0 %v364
    %v469 = vpop.f32.mrf.mxu0
    %v470 = vadd.f32 0.0, %v469
    %v471 = vpop.f32.mrf.mxu0
    %v472 = vadd.f32 0.0, %v471
    %473 = vmatmul.bf16.gmra.mxu0 %v365
    %v474 = vpop.f32.mrf.mxu0
    %v475 = vadd.f32 0.0, %v474
    %v476 = vpop.f32.mrf.mxu0
    %v477 = vadd.f32 0.0, %v476
    %478 = vmatmul.bf16.gmra.mxu0 %v366
    %v479 = vpop.f32.mrf.mxu0
    %v480 = vadd.f32 0.0, %v479
    %v481 = vpop.f32.mrf.mxu0
    %v482 = vadd.f32 0.0, %v481
    %483 = vmatmul.bf16.gmra.mxu0 %v367
    %v484 = vpop.f32.mrf.mxu0
    %v485 = vadd.f32 0.0, %v484
    %v486 = vpop.f32.mrf.mxu0
    %v487 = vadd.f32 0.0, %v486
    %488 = vmatmul.bf16.gmra.mxu0 %v368
    %v489 = vpop.f32.mrf.mxu0
    %v490 = vadd.f32 0.0, %v489
    %v491 = vpop.f32.mrf.mxu0
    %v492 = vadd.f32 0.0, %v491
    %493 = vmatmul.bf16.gmra.mxu0 %v369
    %v494 = vpop.f32.mrf.mxu0
    %v495 = vadd.f32 0.0, %v494
    %v496 = vpop.f32.mrf.mxu0
    %v497 = vadd.f32 0.0, %v496
    %498 = vmatmul.bf16.gmra.mxu0 %v370
    %v499 = vpop.f32.mrf.mxu0
    %v500 = vadd.f32 0.0, %v499
    %v501 = vpop.f32.mrf.mxu0
    %v502 = vadd.f32 0.0, %v501
    %503 = vmatmul.bf16.gmra.mxu0 %v371
    %v504 = vpop.f32.mrf.mxu0
    %v505 = vadd.f32 0.0, %v504
    %v506 = vpop.f32.mrf.mxu0
    %v507 = vadd.f32 0.0, %v506
    %508 = vmatmul.bf16.gmra.mxu0 %v372
    %v509 = vpop.f32.mrf.mxu0
    %v510 = vadd.f32 0.0, %v509
    %v511 = vpop.f32.mrf.mxu0
    %v512 = vadd.f32 0.0, %v511
    %513 = vmatmul.bf16.gmra.mxu0 %v373
    %v514 = vpop.f32.mrf.mxu0
    %v515 = vadd.f32 0.0, %v514
    %v516 = vpop.f32.mrf.mxu0
    %v517 = vadd.f32 0.0, %v516
    %518 = vmatmul.bf16.gmra.mxu0 %v374
    %v519 = vpop.f32.mrf.mxu0
    %v520 = vadd.f32 0.0, %v519
    %v521 = vpop.f32.mrf.mxu0
    %v522 = vadd.f32 0.0, %v521
    %523 = vmatmul.bf16.gmra.mxu0 %v375
    %v524 = vpop.f32.mrf.mxu0
    %v525 = vadd.f32 0.0, %v524
    %v526 = vpop.f32.mrf.mxu0
    %v527 = vadd.f32 0.0, %v526
    %528 = vdwg.mxu0
    %v530 = vrot.slane %v245, 1
    %v531 = vrot.slane %v245, 2
    %v532 = vrot.slane %v245, 3
    %v533 = vrot.slane %v245, 4
    %v534 = vrot.slane %v245, 5
    %v535 = vrot.slane %v245, 6
    %v536 = vrot.slane %v245, 7
    %v537 = vperm.slane %v245, 0
    %v538 = vperm.slane %v530, 0
    %v539 = vperm.slane %v531, 0
    %v540 = vperm.slane %v532, 0
    %v541 = vperm.slane %v533, 0
    %v542 = vperm.slane %v534, 0
    %v543 = vperm.slane %v535, 0
    %v544 = vperm.slane %v536, 0
    %v553 = vadd.f32 %v450, %v537
    %v554 = vadd.f32 %v452, %v537
    %v555 = vadd.f32 %v455, %v537
    %v556 = vadd.f32 %v457, %v537
    %v557 = vadd.f32 %v460, %v538
    %v558 = vadd.f32 %v462, %v538
    %v559 = vadd.f32 %v465, %v538
    %v560 = vadd.f32 %v467, %v538
    %v561 = vadd.f32 %v470, %v539
    %v562 = vadd.f32 %v472, %v539
    %v563 = vadd.f32 %v475, %v539
    %v564 = vadd.f32 %v477, %v539
    %v565 = vadd.f32 %v480, %v540
    %v566 = vadd.f32 %v482, %v540
    %v567 = vadd.f32 %v485, %v540
    %v568 = vadd.f32 %v487, %v540
    %v569 = vadd.f32 %v490, %v541
    %v570 = vadd.f32 %v492, %v541
    %v571 = vadd.f32 %v495, %v541
    %v572 = vadd.f32 %v497, %v541
    %v573 = vadd.f32 %v500, %v542
    %v574 = vadd.f32 %v502, %v542
    %v575 = vadd.f32 %v505, %v542
    %v576 = vadd.f32 %v507, %v542
    %v577 = vadd.f32 %v510, %v543
    %v578 = vadd.f32 %v512, %v543
    %v579 = vadd.f32 %v515, %v543
    %v580 = vadd.f32 %v517, %v543
    %v581 = vadd.f32 %v520, %v544
    %v582 = vadd.f32 %v522, %v544
    %v583 = vadd.f32 %v525, %v544
    %v584 = vadd.f32 %v527, %v544
    %585 = vst [vmem:[#allocation10] sm:$0xff] %v553
    %586 = vst [vmem:[#allocation10 + $0x8] sm:$0xff] %v554
    %587 = vst [vmem:[#allocation10 + $0x10] sm:$0xff] %v555
    %588 = vst [vmem:[#allocation10 + $0x18] sm:$0x1] %v556
    %589 = vst [vmem:[#allocation10 + $0x20] sm:$0xff] %v557
    %590 = vst [vmem:[#allocation10 + $0x28] sm:$0xff] %v558
    %591 = vst [vmem:[#allocation10 + $0x30] sm:$0xff] %v559
    %592 = vst [vmem:[#allocation10 + $0x38] sm:$0x1] %v560
    %593 = vst [vmem:[#allocation10 + $0x40] sm:$0xff] %v561
    %594 = vst [vmem:[#allocation10 + $0x48] sm:$0xff] %v562
    %595 = vst [vmem:[#allocation10 + $0x50] sm:$0xff] %v563
    %596 = vst [vmem:[#allocation10 + $0x58] sm:$0x1] %v564
    %597 = vst [vmem:[#allocation10 + $0x60] sm:$0xff] %v565
    %598 = vst [vmem:[#allocation10 + $0x68] sm:$0xff] %v566
    %599 = vst [vmem:[#allocation10 + $0x70] sm:$0xff] %v567
    %600 = vst [vmem:[#allocation10 + $0x78] sm:$0x1] %v568
    %601 = vst [vmem:[#allocation10 + $0x80] sm:$0xff] %v569
    %602 = vst [vmem:[#allocation10 + $0x88] sm:$0xff] %v570
    %603 = vst [vmem:[#allocation10 + $0x90] sm:$0xff] %v571
    %604 = vst [vmem:[#allocation10 + $0x98] sm:$0x1] %v572
    %605 = vst [vmem:[#allocation10 + $0xa0] sm:$0xff] %v573
    %606 = vst [vmem:[#allocation10 + $0xa8] sm:$0xff] %v574
    %607 = vst [vmem:[#allocation10 + $0xb0] sm:$0xff] %v575
    %608 = vst [vmem:[#allocation10 + $0xb8] sm:$0x1] %v576
    %609 = vst [vmem:[#allocation10 + $0xc0] sm:$0xff] %v577
    %610 = vst [vmem:[#allocation10 + $0xc8] sm:$0xff] %v578
    %611 = vst [vmem:[#allocation10 + $0xd0] sm:$0xff] %v579
    %612 = vst [vmem:[#allocation10 + $0xd8] sm:$0x1] %v580
    %613 = vst [vmem:[#allocation10 + $0xe0] sm:$0xff] %v581
    %614 = vst [vmem:[#allocation10 + $0xe8] sm:$0xff] %v582
    %615 = vst [vmem:[#allocation10 + $0xf0] sm:$0xff] %v583
    %616 = vst [vmem:[#allocation10 + $0xf8] sm:$0x1] %v584
    // Predicated region
    $region38: #{tpu_custom_call.1} parent=1 // pred_check
      _
    $region39: #{tpu_custom_call.1} parent=1 // pred_check_branch
      %618 = sbr.rel (0) target = $region41
    $region40: #{tpu_custom_call.1} parent=1 // pred_region
      %620 = vsyncadd [#allocation4], 1024
      %s621 = sshll.u32 [#allocation10], 4
      %s622 = int_to_ptr.vmem [resolvable:$true] %s621
      %s623 = sshll.u32 %s5, 4
      %s624 = int_to_ptr.hbm [resolvable:$true] %s623
      %629 = dma.vmem_to_hbm [thread:$0]  %s622, 3072, %s624, [#allocation4], 128, 128, 8
    $region41: #{tpu_custom_call.1} parent=1 // pred_fallthru
      _
    // Predicated region
    $region42: #{tpu_custom_call.1} parent=1 // pred_check
      _
    $region43: #{tpu_custom_call.1} parent=1 // pred_check_branch
      %631 = sbr.rel (0) target = $region45
    $region44: #{tpu_custom_call.1} parent=1 // pred_region
      %633 = dma.done [#allocation4], 4096
    $region45: #{tpu_custom_call.1} parent=1 // pred_fallthru
      _
    %634 = vsyncpa [#allocation3], 1
    %635 = vsyncpa [#allocation6], 1
    %636 = vsyncpa [#allocation9], 1
    %637 = vsyncpa [#allocation4], 1

</llo_original>
